<compile_context>
chip_gen: v6e
topology: v6e:2x2x1
jax: 0.10.0
libtpu: 0.0.40
codegen_flags: <defaults>
</compile_context>

<pallas_src>
import jax
import jax.numpy as jnp
from jax.experimental import pallas as pl
from jax.experimental.pallas import tpu as pltpu


def _resblock_kernel(x_ref, temp_ref, pcd_ref, text_ref,
                     w1_ref, b1_ref, w2_ref, b2_ref, o_ref):
    x = x_ref[...]                                   # (Bt, H), input dtype
    cdt = w1_ref.dtype                               # compute dtype (f32 or bf16)

    # x_expand = cat(x, pcd, text) * temp.  Casting to the weight dtype BEFORE
    # the elementwise multiply halves VPU work and the xe footprint when the
    # weights are bf16 (free on v6e/v7x bf16 VALU); it is a no-op for f32.
    # H is lane-aligned, so the concat is a cheap lane-contiguous assembly and
    # the single K=3H dot below fills the 256-deep MXU on v6e/v7x.
    xe = jnp.concatenate(
        [x.astype(cdt), pcd_ref[...].astype(cdt), text_ref[...].astype(cdt)],
        axis=1) * temp_ref[...].astype(cdt)

    # Linear 1: (Bt, 3H) @ (3H, 2H) + b1, ReLU.  f32 MXU accumulation.
    # TODO(synk): on v5e, three K=H partial dots on static row-slices of w1_ref
    # avoid materializing xe through the single store slot; fused is kept here
    # (preferred on v6e/v7x per review).
    h = jnp.dot(xe, w1_ref[...], preferred_element_type=jnp.float32) + b1_ref[...]
    h = jnp.maximum(h, 0.0)

    # Linear 2: (Bt, 2H) @ (2H, H) + b2, ReLU.
    h2 = jnp.dot(h.astype(cdt), w2_ref[...],
                 preferred_element_type=jnp.float32) + b2_ref[...]
    h2 = jnp.maximum(h2, 0.0)

    # Residual add in f32, cast to output dtype.
    o_ref[...] = (x.astype(jnp.float32) + h2).astype(o_ref.dtype)


def _round_up(v, m):
    return ((v + m - 1) // m) * m


def _vmem_capacity_bytes():
    """Chip VMEM capacity (per TensorCore); conservative 64 MiB fallback."""
    try:
        cap = getattr(pltpu.get_tpu_info(), "vmem_capacity_bytes", None)
        if cap:
            return int(cap)
    except Exception:
        pass
    return 64 << 20


def resblock_forward(x, temp_emb, pcd_emb, text_emb, w1, b1, w2, b2,
                     *, block_b=None):
    """x:(B,H) temp_emb:(B,3H) pcd_emb:(B,H) text_emb:(B,H)
       w1:(3H,2H) b1:(1,2H) w2:(2H,H) b2:(1,H)  -> (B,H)

    w1/w2 (and optionally b1/b2) may be bf16 to halve the dominant weight DMA;
    activations are computed/cast in the weight dtype, MXU accumulation is f32.
    H should be a multiple of 128 for clean lane layout.
    NOTE: the output aliases x's buffer (input_output_aliases={0: 0})."""
    B, H = x.shape
    assert temp_emb.shape == (B, 3 * H)
    assert pcd_emb.shape == (B, H) and text_emb.shape == (B, H)
    assert w1.shape == (3 * H, 2 * H) and b1.shape == (1, 2 * H)
    assert w2.shape == (2 * H, H) and b2.shape == (1, H)

    act_it = jnp.dtype(x.dtype).itemsize
    w_it = jnp.dtype(w1.dtype).itemsize

    # --- VMEM budget (dtype-aware) ------------------------------------------
    vmem_cap = _vmem_capacity_bytes()
    vmem_usable = int(vmem_cap * 0.8)      # ~51 MiB on v7x, ~102 MiB on v5e/v6e

    # Resident params (single-buffered via pl.Buffered(1) below).
    param_bytes = sum(int(a.size) * jnp.dtype(a.dtype).itemsize
                      for a in (w1, b1, w2, b2))

    # Per-batch-row bytes of one grid step:
    #   I/O tiles (x:H, temp:3H, pcd:H, text:H, out:H) double-buffered,
    #   plus in-kernel intermediates xe:(3H) in weight dtype, h:(2H)+h2:(H) f32.
    per_row = (2 * (H + 3 * H + H + H + H) * act_it
               + 3 * H * w_it + (2 * H + H) * 4)

    # --- Batch tile selection ------------------------------------------------
    if block_b is None:
        budget = max(vmem_usable - param_bytes - (4 << 20), 2 << 20)
        bt = max(min((budget // 2) // per_row, 2048), 8)   # fill ~half the budget
        # Give the "parallel" axis >= 2 steps once B is big enough so v7x's two
        # TensorCores both get work (negligible cost on single-TC v5e/v6e).
        if B >= 256:
            bt = min(bt, _round_up((B + 1) // 2, 8))
    else:
        bt = block_b
    bt = min(bt, B)
    if bt < B:
        bt = max((bt // 8) * 8, 8)          # (8,128) block constraint when tiling
    grid = (pl.cdiv(B, bt),)

    # Explicit VMEM limit: resident params + double-buffered I/O tiles +
    # intermediates + Mosaic internal scratch slack, capped below physical VMEM.
    need = (param_bytes
            + 2 * bt * (H + 3 * H + H + H + H) * act_it
            + bt * 3 * H * w_it + bt * (2 * H + H) * 4
            + (4 << 20))
    vmem_limit = int(min(max(need, 16 << 20), vmem_usable))

    # Activation tiles march along the batch grid axis (default 2-deep pipeline).
    act = lambda cols: pl.BlockSpec((bt, cols), lambda i: (i, 0))
    # Weights / biases: constant index_map + single buffer -> VMEM-resident, 1x size.
    resident = lambda shape: pl.BlockSpec(shape, lambda i: (0, 0),
                                          pipeline_mode=pl.Buffered(1))

    return pl.pallas_call(
        _resblock_kernel,
        out_shape=jax.ShapeDtypeStruct((B, H), x.dtype),
        grid_spec=pltpu.PrefetchScalarGridSpec(
            num_scalar_prefetch=0,
            grid=grid,
            in_specs=[
                act(H),                      # x
                act(3 * H),                  # temp_emb
                act(H),                      # pcd_emb
                act(H),                      # text_emb
                resident((3 * H, 2 * H)),    # w1
                resident((1, 2 * H)),        # b1
                resident((2 * H, H)),        # w2
                resident((1, H)),            # b2
            ],
            out_specs=act(H),
        ),
        # out aliases x: each grid step reads/writes its own disjoint rows, and a
        # row of x is fully loaded before its output row is stored -> safe.
        input_output_aliases={0: 0},
        compiler_params=pltpu.CompilerParams(
            dimension_semantics=("parallel",),   # shards steps across v7x's 2 TCs
            vmem_limit_bytes=vmem_limit,
        ),
    )(x, temp_emb, pcd_emb, text_emb, w1, b1, w2, b2)


def _reference(x, temp_emb, pcd_emb, text_emb, w1, b1, w2, b2):
    x_expand = jnp.concatenate([x, pcd_emb, text_emb], axis=1) * temp_emb
    h = jnp.maximum(x_expand @ w1 + b1, 0.0)
    h = jnp.maximum(h @ w2 + b2, 0.0)
    return x + h


if __name__ == "__main__":
    B, H = 8, 128          # batch, hidden_dim (small, lane-aligned)
    key = jax.random.PRNGKey(0)
    kx, kt, kp, ks, kw1, kb1, kw2, kb2 = jax.random.split(key, 8)

    def fresh_x():
        # The kernel aliases its output onto argument 0; use a fresh buffer per call.
        return jax.random.normal(kx, (B, H), jnp.float32)

    x        = fresh_x()
    temp_emb = jax.random.normal(kt, (B, 3 * H), jnp.float32)
    pcd_emb  = jax.random.normal(kp, (B, H), jnp.float32)
    text_emb = jax.random.normal(ks, (B, H), jnp.float32)

    # Deterministic synthetic parameters, already stored as (in, out).
    w1 = jax.random.normal(kw1, (3 * H, 2 * H), jnp.float32) * 0.02
    b1 = jax.random.normal(kb1, (1, 2 * H), jnp.float32) * 0.02
    w2 = jax.random.normal(kw2, (2 * H, H), jnp.float32) * 0.02
    b2 = jax.random.normal(kb2, (1, H), jnp.float32) * 0.02

    # References computed up front (before any aliasing kernel call).
    ref_f32 = _reference(x, temp_emb, pcd_emb, text_emb, w1, b1, w2, b2)
    w1_bf, w2_bf = w1.astype(jnp.bfloat16), w2.astype(jnp.bfloat16)
    ref_bf16 = _reference(x, temp_emb, pcd_emb, text_emb,
                          w1_bf.astype(jnp.float32), b1,
                          w2_bf.astype(jnp.float32), b2)
    jax.block_until_ready((ref_f32, ref_bf16))

    # --- f32-weight path -----------------------------------------------------
    out = resblock_forward(fresh_x(), temp_emb, pcd_emb, text_emb, w1, b1, w2, b2)
    out = jax.block_until_ready(out)
    assert out.shape == (B, H)
    assert jnp.allclose(out, ref_f32, atol=1e-4, rtol=1e-4)

    # --- bf16-weight path (halves the dominant weight DMA / resident VMEM) ---
    out_bf = resblock_forward(fresh_x(), temp_emb, pcd_emb, text_emb,
                              w1_bf, b1, w2_bf, b2)
    out_bf = jax.block_until_ready(out_bf)
    assert jnp.allclose(out_bf, ref_bf16, atol=5e-2, rtol=5e-2)

    print("KERNEL_OK")
</pallas_src>

<mosaic_0001>
module attributes {stable_mosaic.version = 11 : i64} {
  func.func @_resblock_kernel(%arg0: i32, %arg1: memref<8x128xf32, #tpu.memory_space<vmem>>, %arg2: memref<8x384xf32, #tpu.memory_space<vmem>>, %arg3: memref<8x128xf32, #tpu.memory_space<vmem>>, %arg4: memref<8x128xf32, #tpu.memory_space<vmem>>, %arg5: memref<384x256xf32, #tpu.memory_space<vmem>>, %arg6: memref<1x256xf32, #tpu.memory_space<vmem>>, %arg7: memref<256x128xf32, #tpu.memory_space<vmem>>, %arg8: memref<1x128xf32, #tpu.memory_space<vmem>>, %arg9: memref<8x128xf32, #tpu.memory_space<vmem>>) attributes {dimension_semantics = [#tpu.dimension_semantics<parallel>], iteration_bounds = array<i64: 1>, scalar_prefetch = 0 : i64, scratch_operands = 0 : i64, tpu.core_type = #tpu.core_type<tc>, window_params = [{transform_indices = @transform_0, window_bounds = array<i64: 8, 128>}, {transform_indices = @transform_1, window_bounds = array<i64: 8, 384>}, {transform_indices = @transform_2, window_bounds = array<i64: 8, 128>}, {transform_indices = @transform_3, window_bounds = array<i64: 8, 128>}, {pipeline_mode = #tpu.pipeline_mode<synchronous>, transform_indices = @transform_4, window_bounds = array<i64: 384, 256>}, {pipeline_mode = #tpu.pipeline_mode<synchronous>, transform_indices = @transform_5, window_bounds = array<i64: 1, 256>}, {pipeline_mode = #tpu.pipeline_mode<synchronous>, transform_indices = @transform_6, window_bounds = array<i64: 256, 128>}, {pipeline_mode = #tpu.pipeline_mode<synchronous>, transform_indices = @transform_7, window_bounds = array<i64: 1, 128>}, {transform_indices = @transform_8, window_bounds = array<i64: 8, 128>}]} {
    %c0 = arith.constant 0 : index
    %c0_0 = arith.constant 0 : index
    %0 = vector.load %arg1[%c0, %c0_0] : memref<8x128xf32, #tpu.memory_space<vmem>>, vector<8x128xf32>
    %c0_1 = arith.constant 0 : index
    %c0_2 = arith.constant 0 : index
    %1 = vector.load %arg3[%c0_1, %c0_2] : memref<8x128xf32, #tpu.memory_space<vmem>>, vector<8x128xf32>
    %c0_3 = arith.constant 0 : index
    %c0_4 = arith.constant 0 : index
    %2 = vector.load %arg4[%c0_3, %c0_4] : memref<8x128xf32, #tpu.memory_space<vmem>>, vector<8x128xf32>
    %3 = tpu.concatenate %0, %1, %2 in 1 : vector<8x128xf32>, vector<8x128xf32>, vector<8x128xf32> -> vector<8x384xf32>
    %c0_5 = arith.constant 0 : index
    %c0_6 = arith.constant 0 : index
    %4 = vector.load %arg2[%c0_5, %c0_6] : memref<8x384xf32, #tpu.memory_space<vmem>>, vector<8x384xf32>
    %5 = arith.mulf %3, %4 : vector<8x384xf32>
    %c0_7 = arith.constant 0 : index
    %c0_8 = arith.constant 0 : index
    %6 = vector.load %arg5[%c0_7, %c0_8] : memref<384x256xf32, #tpu.memory_space<vmem>>, vector<384x256xf32>
    %cst = arith.constant dense<0.000000e+00> : vector<8x256xf32>
    %7 = tpu.matmul %5, %6, %cst {dimension_numbers = #tpu.dot_dimension_numbers<[1], [0], [0], [1], [0, 0, 1, 1], [], []>} : vector<8x384xf32>, vector<384x256xf32>, vector<8x256xf32> -> vector<8x256xf32>
    %c0_9 = arith.constant 0 : index
    %c0_10 = arith.constant 0 : index
    %8 = vector.load %arg6[%c0_9, %c0_10] : memref<1x256xf32, #tpu.memory_space<vmem>>, vector<1x256xf32>
    %9 = vector.broadcast %8 : vector<1x256xf32> to vector<8x256xf32>
    %10 = arith.addf %7, %9 : vector<8x256xf32>
    %cst_11 = arith.constant 0.000000e+00 : f32
    %11 = vector.broadcast %cst_11 : f32 to vector<8x256xf32>
    %12 = arith.maximumf %10, %11 : vector<8x256xf32>
    %c0_12 = arith.constant 0 : index
    %c0_13 = arith.constant 0 : index
    %13 = vector.load %arg7[%c0_12, %c0_13] : memref<256x128xf32, #tpu.memory_space<vmem>>, vector<256x128xf32>
    %cst_14 = arith.constant dense<0.000000e+00> : vector<8x128xf32>
    %14 = tpu.matmul %12, %13, %cst_14 {dimension_numbers = #tpu.dot_dimension_numbers<[1], [0], [0], [1], [0, 0, 1, 1], [], []>} : vector<8x256xf32>, vector<256x128xf32>, vector<8x128xf32> -> vector<8x128xf32>
    %c0_15 = arith.constant 0 : index
    %c0_16 = arith.constant 0 : index
    %15 = vector.load %arg8[%c0_15, %c0_16] : memref<1x128xf32, #tpu.memory_space<vmem>>, vector<1x128xf32>
    %16 = vector.broadcast %15 : vector<1x128xf32> to vector<8x128xf32>
    %17 = arith.addf %14, %16 : vector<8x128xf32>
    %cst_17 = arith.constant 0.000000e+00 : f32
    %18 = vector.broadcast %cst_17 : f32 to vector<8x128xf32>
    %19 = arith.maximumf %17, %18 : vector<8x128xf32>
    %20 = arith.addf %0, %19 : vector<8x128xf32>
    %c0_18 = arith.constant 0 : index
    %c0_19 = arith.constant 0 : index
    %21 = vector.load %arg9[%c0_18, %c0_19] : memref<8x128xf32, #tpu.memory_space<vmem>>, vector<8x128xf32>
    tpu.vector_store %arg9[%c0_18, %c0_19], %20 {strides = array<i32>} : memref<8x128xf32, #tpu.memory_space<vmem>>, vector<8x128xf32>,
    return
  }
  func.func @transform_0(%arg0: i32) -> (i32, i32) {
    %c0_i32 = arith.constant 0 : i32
    %c0_i32_0 = arith.constant 0 : i32
    return %arg0, %c0_i32 : i32, i32
  }
  func.func @transform_1(%arg0: i32) -> (i32, i32) {
    %c0_i32 = arith.constant 0 : i32
    %c0_i32_0 = arith.constant 0 : i32
    return %arg0, %c0_i32 : i32, i32
  }
  func.func @transform_2(%arg0: i32) -> (i32, i32) {
    %c0_i32 = arith.constant 0 : i32
    %c0_i32_0 = arith.constant 0 : i32
    return %arg0, %c0_i32 : i32, i32
  }
  func.func @transform_3(%arg0: i32) -> (i32, i32) {
    %c0_i32 = arith.constant 0 : i32
    %c0_i32_0 = arith.constant 0 : i32
    return %arg0, %c0_i32 : i32, i32
  }
  func.func @transform_4(%arg0: i32) -> (i32, i32) {
    %c0_i32 = arith.constant 0 : i32
    %c0_i32_0 = arith.constant 0 : i32
    %c0_i32_1 = arith.constant 0 : i32
    return %c0_i32, %c0_i32_0 : i32, i32
  }
  func.func @transform_5(%arg0: i32) -> (i32, i32) {
    %c0_i32 = arith.constant 0 : i32
    %c0_i32_0 = arith.constant 0 : i32
    %c0_i32_1 = arith.constant 0 : i32
    return %c0_i32, %c0_i32_0 : i32, i32
  }
  func.func @transform_6(%arg0: i32) -> (i32, i32) {
    %c0_i32 = arith.constant 0 : i32
    %c0_i32_0 = arith.constant 0 : i32
    %c0_i32_1 = arith.constant 0 : i32
    return %c0_i32, %c0_i32_0 : i32, i32
  }
  func.func @transform_7(%arg0: i32) -> (i32, i32) {
    %c0_i32 = arith.constant 0 : i32
    %c0_i32_0 = arith.constant 0 : i32
    %c0_i32_1 = arith.constant 0 : i32
    return %c0_i32, %c0_i32_0 : i32, i32
  }
  func.func @transform_8(%arg0: i32) -> (i32, i32) {
    %c0_i32 = arith.constant 0 : i32
    %c0_i32_0 = arith.constant 0 : i32
    return %arg0, %c0_i32 : i32, i32
  }
}

</mosaic_0001>

<llo_original>
// kernel: tpu_custom_call.1
$region0: #{tpu_custom_call.1}
  #allocation0 [shape = 'u32[]', space=smem, size = 0x4, offset = 0x4, fixed_abs, tag = 'smem constant byte address 0x4 - core index']
  #allocation1 [shape = 'u32[144,128]{1,0:T(1,128)}', space=vmem, size = 0x12000, scoped, tag = 'internal scratch']
  %s0 = inlined_call_operand.hbm [shape: f32[8,128], index: 0, kind: input, shape index: {}, may-alias: {0,8}]
  %s1 = inlined_call_operand.hbm [shape: f32[8,384], index: 1, kind: input, shape index: {}]
  %s2 = inlined_call_operand.vmem [shape: f32[8,128], index: 2, kind: input, shape index: {}]
  %s3 = inlined_call_operand.vmem [shape: f32[8,128], index: 3, kind: input, shape index: {}]
  %s4 = inlined_call_operand.hbm [shape: f32[384,256], index: 4, kind: input, shape index: {}]
  %s5 = inlined_call_operand.vmem [shape: f32[1,256], index: 5, kind: input, shape index: {}]
  %s6 = inlined_call_operand.hbm [shape: f32[256,128], index: 6, kind: input, shape index: {}]
  %s7 = inlined_call_operand.vmem [shape: f32[1,128], index: 7, kind: input, shape index: {}]
  %s8 = inlined_call_operand.hbm [shape: f32[8,128], index: 8, kind: output, shape index: {}, may-alias: {0,8}]
  %s9 = sld [smem:[#allocation0]]
  $region58: #{tpu_custom_call.1} parent=0
    _
  %s11 = ssub.s32 1, %s9
  %s12 = scalar_select 0, %s11, %s9
  $region1: #{tpu_custom_call.1} parent=0
    #allocation2 [shape = 'u8[4096]{0}', space=vmem, size = 0x1000, scoped, tag = 'input window, operand 0, single buffered']
    #allocation3 [shape = 's32[1]{0}', space=sflag, size = 0x4, scoped, tag = 'scoped memory for tpu_custom_call.1']
    #allocation4 [shape = 's32[1]{0}', space=sflag, size = 0x4, scoped, tag = 'scoped memory for tpu_custom_call.1']
    #allocation5 [shape = 'u8[12288]{0}', space=vmem, size = 0x3000, scoped, tag = 'input window, operand 1, single buffered']
    #allocation6 [shape = 's32[1]{0}', space=sflag, size = 0x4, scoped, tag = 'scoped memory for tpu_custom_call.1']
    #allocation7 [shape = 'u8[393216]{0}', space=vmem, size = 0x60000, scoped, tag = 'input window, operand 4, single buffered']
    #allocation8 [shape = 'u8[131072]{0}', space=vmem, size = 0x20000, scoped, tag = 'input window, operand 6, single buffered']
    #allocation9 [shape = 's32[1]{0}', space=sflag, size = 0x4, scoped, tag = 'scoped memory for tpu_custom_call.1']
    #allocation10 [shape = 'u8[4096]{0}', space=vmem, size = 0x1000, scoped, tag = 'output window, operand 0, single buffered']
    %13 = vsyncpa [#allocation3], 0
    %14 = vsyncpa [#allocation6], 0
    %15 = vsyncpa [#allocation9], 0
    %16 = vsyncpa [#allocation4], 0
    // Predicated region
    $region2: #{tpu_custom_call.1} parent=1 // pred_check
      _
    $region3: #{tpu_custom_call.1} parent=1 // pred_check_branch
      %18 = sbr.rel (0) target = $region5
    $region4: #{tpu_custom_call.1} parent=1 // pred_region
      %s20 = ssub.s32 128, 128
      %21 = vsyncadd [#allocation3], %s20
      %s23 = sshll.u32 [#allocation2], 4
      %s24 = int_to_ptr.vmem [resolvable:$true] %s23
      %26 = dma.hbm_to_vmem [thread:$0]  %s0, 128, %s24, [#allocation3]
    $region5: #{tpu_custom_call.1} parent=1 // pred_fallthru
      _
    // Predicated region
    $region6: #{tpu_custom_call.1} parent=1 // pred_check
      _
    $region7: #{tpu_custom_call.1} parent=1 // pred_check_branch
      %28 = sbr.rel (0) target = $region9
    $region8: #{tpu_custom_call.1} parent=1 // pred_region
      %s30 = ssub.s32 384, 384
      %31 = vsyncadd [#allocation6], %s30
      %s33 = sshll.u32 [#allocation5], 4
      %s34 = int_to_ptr.vmem [resolvable:$true] %s33
      %36 = dma.hbm_to_vmem [thread:$0]  %s1, 384, %s34, [#allocation6]
    $region9: #{tpu_custom_call.1} parent=1 // pred_fallthru
      _
    // Predicated region
    $region10: #{tpu_custom_call.1} parent=1 // pred_check
      _
    $region11: #{tpu_custom_call.1} parent=1 // pred_check_branch
      %38 = sbr.rel (0) target = $region13
    $region12: #{tpu_custom_call.1} parent=1 // pred_region
      _
    $region13: #{tpu_custom_call.1} parent=1 // pred_fallthru
      _
    // Predicated region
    $region14: #{tpu_custom_call.1} parent=1 // pred_check
      _
    $region15: #{tpu_custom_call.1} parent=1 // pred_check_branch
      %40 = sbr.rel (0) target = $region17
    $region16: #{tpu_custom_call.1} parent=1 // pred_region
      _
    $region17: #{tpu_custom_call.1} parent=1 // pred_fallthru
      _
    // Predicated region
    $region18: #{tpu_custom_call.1} parent=1 // pred_check
      _
    $region19: #{tpu_custom_call.1} parent=1 // pred_check_branch
      %42 = sbr.rel (0) target = $region21
    $region20: #{tpu_custom_call.1} parent=1 // pred_region
      %s44 = ssub.s32 12288, 12288
      %45 = vsyncadd [#allocation6], %s44
      %s46 = sshll.u32 [#allocation7], 4
      %s47 = int_to_ptr.vmem [resolvable:$true] %s46
      %52 = dma.hbm_to_vmem [thread:$0]  %s4, 12288, %s47, [#allocation6], 256, 256, 16
    $region21: #{tpu_custom_call.1} parent=1 // pred_fallthru
      _
    // Predicated region
    $region22: #{tpu_custom_call.1} parent=1 // pred_check
      _
    $region23: #{tpu_custom_call.1} parent=1 // pred_check_branch
      %54 = sbr.rel (0) target = $region25
    $region24: #{tpu_custom_call.1} parent=1 // pred_region
      _
    $region25: #{tpu_custom_call.1} parent=1 // pred_fallthru
      _
    // Predicated region
    $region26: #{tpu_custom_call.1} parent=1 // pred_check
      _
    $region27: #{tpu_custom_call.1} parent=1 // pred_check_branch
      %56 = sbr.rel (0) target = $region29
    $region28: #{tpu_custom_call.1} parent=1 // pred_region
      %s58 = ssub.s32 4096, 4096
      %59 = vsyncadd [#allocation9], %s58
      %s60 = sshll.u32 [#allocation8], 4
      %s61 = int_to_ptr.vmem [resolvable:$true] %s60
      %66 = dma.hbm_to_vmem [thread:$0]  %s6, 4096, %s61, [#allocation9], 128, 128, 8
    $region29: #{tpu_custom_call.1} parent=1 // pred_fallthru
      _
    // Predicated region
    $region30: #{tpu_custom_call.1} parent=1 // pred_check
      _
    $region31: #{tpu_custom_call.1} parent=1 // pred_check_branch
      %68 = sbr.rel (0) target = $region33
    $region32: #{tpu_custom_call.1} parent=1 // pred_region
      _
    $region33: #{tpu_custom_call.1} parent=1 // pred_fallthru
      _
    // Predicated region
    $region34: #{tpu_custom_call.1} parent=1 // pred_check
      _
    $region35: #{tpu_custom_call.1} parent=1 // pred_check_branch
      %70 = sbr.rel (0) target = $region37
    $region36: #{tpu_custom_call.1} parent=1 // pred_region
      %71 = dma.done [#allocation3], 128
    $region37: #{tpu_custom_call.1} parent=1 // pred_fallthru
      _
    // Predicated region
    $region38: #{tpu_custom_call.1} parent=1 // pred_check
      _
    $region39: #{tpu_custom_call.1} parent=1 // pred_check_branch
      %73 = sbr.rel (0) target = $region41
    $region40: #{tpu_custom_call.1} parent=1 // pred_region
      %74 = dma.done [#allocation6], 384
    $region41: #{tpu_custom_call.1} parent=1 // pred_fallthru
      _
    // Predicated region
    $region42: #{tpu_custom_call.1} parent=1 // pred_check
      _
    $region43: #{tpu_custom_call.1} parent=1 // pred_check_branch
      %76 = sbr.rel (0) target = $region45
    $region44: #{tpu_custom_call.1} parent=1 // pred_region
      %77 = dma.done [#allocation6], 12288
    $region45: #{tpu_custom_call.1} parent=1 // pred_fallthru
      _
    // Predicated region
    $region46: #{tpu_custom_call.1} parent=1 // pred_check
      _
    $region47: #{tpu_custom_call.1} parent=1 // pred_check_branch
      %79 = sbr.rel (0) target = $region49
    $region48: #{tpu_custom_call.1} parent=1 // pred_region
      %80 = dma.done [#allocation9], 4096
    $region49: #{tpu_custom_call.1} parent=1 // pred_fallthru
      _
    %v81 = vld [vmem:[#allocation2] sm:$0xff]
    %v82 = vld [vmem:[%s2] sm:$0xff]
    %v83 = vld [vmem:[%s3] sm:$0xff]
    %v84 = vld [vmem:[#allocation5] sm:$0xff]
    %v85 = vld [vmem:[#allocation5 + $0x8] sm:$0xff]
    %v86 = vld [vmem:[#allocation5 + $0x10] sm:$0xff]
    %v87 = vmul.f32 %v81, %v84
    %v88 = vmul.f32 %v82, %v85
    %v89 = vmul.f32 %v83, %v86
    %v90 = vld [vmem:[#allocation7] sm:$0xff]
    %v91 = vld [vmem:[#allocation7 + $0x8] sm:$0xff]
    %v92 = vld [vmem:[#allocation7 + $0x10] sm:$0xff]
    %v93 = vld [vmem:[#allocation7 + $0x18] sm:$0xff]
    %v94 = vld [vmem:[#allocation7 + $0x20] sm:$0xff]
    %v95 = vld [vmem:[#allocation7 + $0x28] sm:$0xff]
    %v96 = vld [vmem:[#allocation7 + $0x30] sm:$0xff]
    %v97 = vld [vmem:[#allocation7 + $0x38] sm:$0xff]
    %v98 = vld [vmem:[#allocation7 + $0x40] sm:$0xff]
    %v99 = vld [vmem:[#allocation7 + $0x48] sm:$0xff]
    %v100 = vld [vmem:[#allocation7 + $0x50] sm:$0xff]
    %v101 = vld [vmem:[#allocation7 + $0x58] sm:$0xff]
    %v102 = vld [vmem:[#allocation7 + $0x60] sm:$0xff]
    %v103 = vld [vmem:[#allocation7 + $0x68] sm:$0xff]
    %v104 = vld [vmem:[#allocation7 + $0x70] sm:$0xff]
    %v105 = vld [vmem:[#allocation7 + $0x78] sm:$0xff]
    %v106 = vld [vmem:[#allocation7 + $0x80] sm:$0xff]
    %v107 = vld [vmem:[#allocation7 + $0x88] sm:$0xff]
    %v108 = vld [vmem:[#allocation7 + $0x90] sm:$0xff]
    %v109 = vld [vmem:[#allocation7 + $0x98] sm:$0xff]
    %v110 = vld [vmem:[#allocation7 + $0xa0] sm:$0xff]
    %v111 = vld [vmem:[#allocation7 + $0xa8] sm:$0xff]
    %v112 = vld [vmem:[#allocation7 + $0xb0] sm:$0xff]
    %v113 = vld [vmem:[#allocation7 + $0xb8] sm:$0xff]
    %v114 = vld [vmem:[#allocation7 + $0xc0] sm:$0xff]
    %v115 = vld [vmem:[#allocation7 + $0xc8] sm:$0xff]
    %v116 = vld [vmem:[#allocation7 + $0xd0] sm:$0xff]
    %v117 = vld [vmem:[#allocation7 + $0xd8] sm:$0xff]
    %v118 = vld [vmem:[#allocation7 + $0xe0] sm:$0xff]
    %v119 = vld [vmem:[#allocation7 + $0xe8] sm:$0xff]
    %v120 = vld [vmem:[#allocation7 + $0xf0] sm:$0xff]
    %v121 = vld [vmem:[#allocation7 + $0xf8] sm:$0xff]
    %v122 = vld [vmem:[#allocation7 + $0x100] sm:$0xff]
    %v123 = vld [vmem:[#allocation7 + $0x108] sm:$0xff]
    %v124 = vld [vmem:[#allocation7 + $0x110] sm:$0xff]
    %v125 = vld [vmem:[#allocation7 + $0x118] sm:$0xff]
    %v126 = vld [vmem:[#allocation7 + $0x120] sm:$0xff]
    %v127 = vld [vmem:[#allocation7 + $0x128] sm:$0xff]
    %v128 = vld [vmem:[#allocation7 + $0x130] sm:$0xff]
    %v129 = vld [vmem:[#allocation7 + $0x138] sm:$0xff]
    %v130 = vld [vmem:[#allocation7 + $0x140] sm:$0xff]
    %v131 = vld [vmem:[#allocation7 + $0x148] sm:$0xff]
    %v132 = vld [vmem:[#allocation7 + $0x150] sm:$0xff]
    %v133 = vld [vmem:[#allocation7 + $0x158] sm:$0xff]
    %v134 = vld [vmem:[#allocation7 + $0x160] sm:$0xff]
    %v135 = vld [vmem:[#allocation7 + $0x168] sm:$0xff]
    %v136 = vld [vmem:[#allocation7 + $0x170] sm:$0xff]
    %v137 = vld [vmem:[#allocation7 + $0x178] sm:$0xff]
    %v138 = vld [vmem:[#allocation7 + $0x180] sm:$0xff]
    %v139 = vld [vmem:[#allocation7 + $0x188] sm:$0xff]
    %v140 = vld [vmem:[#allocation7 + $0x190] sm:$0xff]
    %v141 = vld [vmem:[#allocation7 + $0x198] sm:$0xff]
    %v142 = vld [vmem:[#allocation7 + $0x1a0] sm:$0xff]
    %v143 = vld [vmem:[#allocation7 + $0x1a8] sm:$0xff]
    %v144 = vld [vmem:[#allocation7 + $0x1b0] sm:$0xff]
    %v145 = vld [vmem:[#allocation7 + $0x1b8] sm:$0xff]
    %v146 = vld [vmem:[#allocation7 + $0x1c0] sm:$0xff]
    %v147 = vld [vmem:[#allocation7 + $0x1c8] sm:$0xff]
    %v148 = vld [vmem:[#allocation7 + $0x1d0] sm:$0xff]
    %v149 = vld [vmem:[#allocation7 + $0x1d8] sm:$0xff]
    %v150 = vld [vmem:[#allocation7 + $0x1e0] sm:$0xff]
    %v151 = vld [vmem:[#allocation7 + $0x1e8] sm:$0xff]
    %v152 = vld [vmem:[#allocation7 + $0x1f0] sm:$0xff]
    %v153 = vld [vmem:[#allocation7 + $0x1f8] sm:$0xff]
    %v154 = vld [vmem:[#allocation7 + $0x200] sm:$0xff]
    %v155 = vld [vmem:[#allocation7 + $0x208] sm:$0xff]
    %v156 = vld [vmem:[#allocation7 + $0x210] sm:$0xff]
    %v157 = vld [vmem:[#allocation7 + $0x218] sm:$0xff]
    %v158 = vld [vmem:[#allocation7 + $0x220] sm:$0xff]
    %v159 = vld [vmem:[#allocation7 + $0x228] sm:$0xff]
    %v160 = vld [vmem:[#allocation7 + $0x230] sm:$0xff]
    %v161 = vld [vmem:[#allocation7 + $0x238] sm:$0xff]
    %v162 = vld [vmem:[#allocation7 + $0x240] sm:$0xff]
    %v163 = vld [vmem:[#allocation7 + $0x248] sm:$0xff]
    %v164 = vld [vmem:[#allocation7 + $0x250] sm:$0xff]
    %v165 = vld [vmem:[#allocation7 + $0x258] sm:$0xff]
    %v166 = vld [vmem:[#allocation7 + $0x260] sm:$0xff]
    %v167 = vld [vmem:[#allocation7 + $0x268] sm:$0xff]
    %v168 = vld [vmem:[#allocation7 + $0x270] sm:$0xff]
    %v169 = vld [vmem:[#allocation7 + $0x278] sm:$0xff]
    %v170 = vld [vmem:[#allocation7 + $0x280] sm:$0xff]
    %v171 = vld [vmem:[#allocation7 + $0x288] sm:$0xff]
    %v172 = vld [vmem:[#allocation7 + $0x290] sm:$0xff]
    %v173 = vld [vmem:[#allocation7 + $0x298] sm:$0xff]
    %v174 = vld [vmem:[#allocation7 + $0x2a0] sm:$0xff]
    %v175 = vld [vmem:[#allocation7 + $0x2a8] sm:$0xff]
    %v176 = vld [vmem:[#allocation7 + $0x2b0] sm:$0xff]
    %v177 = vld [vmem:[#allocation7 + $0x2b8] sm:$0xff]
    %v178 = vld [vmem:[#allocation7 + $0x2c0] sm:$0xff]
    %v179 = vld [vmem:[#allocation7 + $0x2c8] sm:$0xff]
    %v180 = vld [vmem:[#allocation7 + $0x2d0] sm:$0xff]
    %v181 = vld [vmem:[#allocation7 + $0x2d8] sm:$0xff]
    %v182 = vld [vmem:[#allocation7 + $0x2e0] sm:$0xff]
    %v183 = vld [vmem:[#allocation7 + $0x2e8] sm:$0xff]
    %v184 = vld [vmem:[#allocation7 + $0x2f0] sm:$0xff]
    %v185 = vld [vmem:[#allocation7 + $0x2f8] sm:$0xff]
    %v186 = vld [vmem:[%s5] sm:$0x3]
    %v188 = vlaneseq
    %v189 = vshrl.u32 %v188, 7
    %v190 = vsub.s32 0, %v189
    %v191 = vrot.slane %v186, %v190
    %v192 = vlaneseq
    %v193 = vshrl.u32 %v192, 7
    %v194 = vsub.s32 1, %v193
    %v195 = vrot.slane %v186, %v194
    %198 = vmatprep.subr.mxu0 %v121
    %199 = vmatpush1.msra.mxu0 %v120
    %200 = vmatprep.subr.mxu0 %v119
    %201 = vmatpush1.msra.mxu0 %v118
    %202 = vmatprep.subr.mxu0 %v117
    %203 = vmatpush1.msra.mxu0 %v116
    %204 = vmatprep.subr.mxu0 %v115
    %205 = vmatpush1.msra.mxu0 %v114
    %206 = vmatprep.subr.mxu0 %v113
    %207 = vmatpush1.msra.mxu0 %v112
    %208 = vmatprep.subr.mxu0 %v111
    %209 = vmatpush1.msra.mxu0 %v110
    %210 = vmatprep.subr.mxu0 %v109
    %211 = vmatpush1.msra.mxu0 %v108
    %212 = vmatprep.subr.mxu0 %v107
    %213 = vmatpush1.msra.mxu0 %v106
    %214 = vmatprep.subr.mxu0 %v105
    %215 = vmatpush1.msra.mxu0 %v104
    %216 = vmatprep.subr.mxu0 %v103
    %217 = vmatpush1.msra.mxu0 %v102
    %218 = vmatprep.subr.mxu0 %v101
    %219 = vmatpush1.msra.mxu0 %v100
    %220 = vmatprep.subr.mxu0 %v99
    %221 = vmatpush1.msra.mxu0 %v98
    %222 = vmatprep.subr.mxu0 %v97
    %223 = vmatpush1.msra.mxu0 %v96
    %224 = vmatprep.subr.mxu0 %v95
    %225 = vmatpush1.msra.mxu0 %v94
    %226 = vmatprep.subr.mxu0 %v93
    %227 = vmatpush1.msra.mxu0 %v92
    %228 = vmatprep.subr.mxu0 %v91
    %229 = vmatpush1.msra.mxu0 %v90
    %230 = vmatprep.subr.mxu0 %v153
    %231 = vmatpush2.msra.mxu0 %v152
    %232 = vmatprep.subr.mxu0 %v151
    %233 = vmatpush2.msra.mxu0 %v150
    %234 = vmatprep.subr.mxu0 %v149
    %235 = vmatpush2.msra.mxu0 %v148
    %236 = vmatprep.subr.mxu0 %v147
    %237 = vmatpush2.msra.mxu0 %v146
    %238 = vmatprep.subr.mxu0 %v145
    %239 = vmatpush2.msra.mxu0 %v144
    %240 = vmatprep.subr.mxu0 %v143
    %241 = vmatpush2.msra.mxu0 %v142
    %242 = vmatprep.subr.mxu0 %v141
    %243 = vmatpush2.msra.mxu0 %v140
    %244 = vmatprep.subr.mxu0 %v139
    %245 = vmatpush2.msra.mxu0 %v138
    %246 = vmatprep.subr.mxu0 %v137
    %247 = vmatpush2.msra.mxu0 %v136
    %248 = vmatprep.subr.mxu0 %v135
    %249 = vmatpush2.msra.mxu0 %v134
    %250 = vmatprep.subr.mxu0 %v133
    %251 = vmatpush2.msra.mxu0 %v132
    %252 = vmatprep.subr.mxu0 %v131
    %253 = vmatpush2.msra.mxu0 %v130
    %254 = vmatprep.subr.mxu0 %v129
    %255 = vmatpush2.msra.mxu0 %v128
    %256 = vmatprep.subr.mxu0 %v127
    %257 = vmatpush2.msra.mxu0 %v126
    %258 = vmatprep.subr.mxu0 %v125
    %259 = vmatpush2.msra.mxu0 %v124
    %260 = vmatprep.subr.mxu0 %v123
    %261 = vmatpush2.msra.mxu0 %v122
    %262 = vmatprep.mubr.f32.mxu0 %v88
    %263 = vmatmul.mubr.f32.gmra.mxu0 %v87
    %v264 = vpop.f32.mrf.mxu0
    %v265 = vadd.f32 %v191, %v264
    %v266 = vpop.f32.mrf.mxu0
    %v267 = vadd.f32 %v195, %v266
    %268 = vdwg.mxu0
    %269 = vmatprep.subr.mxu0 %v185
    %270 = vmatpush1.msra.mxu0 %v184
    %271 = vmatprep.subr.mxu0 %v183
    %272 = vmatpush1.msra.mxu0 %v182
    %273 = vmatprep.subr.mxu0 %v181
    %274 = vmatpush1.msra.mxu0 %v180
    %275 = vmatprep.subr.mxu0 %v179
    %276 = vmatpush1.msra.mxu0 %v178
    %277 = vmatprep.subr.mxu0 %v177
    %278 = vmatpush1.msra.mxu0 %v176
    %279 = vmatprep.subr.mxu0 %v175
    %280 = vmatpush1.msra.mxu0 %v174
    %281 = vmatprep.subr.mxu0 %v173
    %282 = vmatpush1.msra.mxu0 %v172
    %283 = vmatprep.subr.mxu0 %v171
    %284 = vmatpush1.msra.mxu0 %v170
    %285 = vmatprep.subr.mxu0 %v169
    %286 = vmatpush1.msra.mxu0 %v168
    %287 = vmatprep.subr.mxu0 %v167
    %288 = vmatpush1.msra.mxu0 %v166
    %289 = vmatprep.subr.mxu0 %v165
    %290 = vmatpush1.msra.mxu0 %v164
    %291 = vmatprep.subr.mxu0 %v163
    %292 = vmatpush1.msra.mxu0 %v162
    %293 = vmatprep.subr.mxu0 %v161
    %294 = vmatpush1.msra.mxu0 %v160
    %295 = vmatprep.subr.mxu0 %v159
    %296 = vmatpush1.msra.mxu0 %v158
    %297 = vmatprep.subr.mxu0 %v157
    %298 = vmatpush1.msra.mxu0 %v156
    %299 = vmatprep.subr.mxu0 %v155
    %300 = vmatpush1.msra.mxu0 %v154
    %301 = vmatprep.subr.mxu0 0.0
    %302 = vmatpush2.msra.mxu0 0.0
    %303 = vmatprep.subr.mxu0 0.0
    %304 = vmatpush2.msra.mxu0 0.0
    %305 = vmatprep.subr.mxu0 0.0
    %306 = vmatpush2.msra.mxu0 0.0
    %307 = vmatprep.subr.mxu0 0.0
    %308 = vmatpush2.msra.mxu0 0.0
    %309 = vmatprep.subr.mxu0 0.0
    %310 = vmatpush2.msra.mxu0 0.0
    %311 = vmatprep.subr.mxu0 0.0
    %312 = vmatpush2.msra.mxu0 0.0
    %313 = vmatprep.subr.mxu0 0.0
    %314 = vmatpush2.msra.mxu0 0.0
    %315 = vmatprep.subr.mxu0 0.0
    %316 = vmatpush2.msra.mxu0 0.0
    %317 = vmatprep.subr.mxu0 0.0
    %318 = vmatpush2.msra.mxu0 0.0
    %319 = vmatprep.subr.mxu0 0.0
    %320 = vmatpush2.msra.mxu0 0.0
    %321 = vmatprep.subr.mxu0 0.0
    %322 = vmatpush2.msra.mxu0 0.0
    %323 = vmatprep.subr.mxu0 0.0
    %324 = vmatpush2.msra.mxu0 0.0
    %325 = vmatprep.subr.mxu0 0.0
    %326 = vmatpush2.msra.mxu0 0.0
    %327 = vmatprep.subr.mxu0 0.0
    %328 = vmatpush2.msra.mxu0 0.0
    %329 = vmatprep.subr.mxu0 0.0
    %330 = vmatpush2.msra.mxu0 0.0
    %331 = vmatprep.subr.mxu0 0.0
    %332 = vmatpush2.msra.mxu0 0.0
    %333 = vmatprep.mubr.f32.mxu0 0.0
    %334 = vmatmul.mubr.f32.gmra.mxu0 %v89
    %v335 = vpop.f32.mrf.mxu0
    %v336 = vadd.f32 %v265, %v335
    %v337 = vpop.f32.mrf.mxu0
    %v338 = vadd.f32 %v267, %v337
    %339 = vdwg.mxu0
    %v340 = vmax.f32 %v336, 0.0
    %v341 = vmax.f32 %v338, 0.0
    %v342 = vld [vmem:[#allocation8] sm:$0xff]
    %v343 = vld [vmem:[#allocation8 + $0x8] sm:$0xff]
    %v344 = vld [vmem:[#allocation8 + $0x10] sm:$0xff]
    %v345 = vld [vmem:[#allocation8 + $0x18] sm:$0xff]
    %v346 = vld [vmem:[#allocation8 + $0x20] sm:$0xff]
    %v347 = vld [vmem:[#allocation8 + $0x28] sm:$0xff]
    %v348 = vld [vmem:[#allocation8 + $0x30] sm:$0xff]
    %v349 = vld [vmem:[#allocation8 + $0x38] sm:$0xff]
    %v350 = vld [vmem:[#allocation8 + $0x40] sm:$0xff]
    %v351 = vld [vmem:[#allocation8 + $0x48] sm:$0xff]
    %v352 = vld [vmem:[#allocation8 + $0x50] sm:$0xff]
    %v353 = vld [vmem:[#allocation8 + $0x58] sm:$0xff]
    %v354 = vld [vmem:[#allocation8 + $0x60] sm:$0xff]
    %v355 = vld [vmem:[#allocation8 + $0x68] sm:$0xff]
    %v356 = vld [vmem:[#allocation8 + $0x70] sm:$0xff]
    %v357 = vld [vmem:[#allocation8 + $0x78] sm:$0xff]
    %v358 = vld [vmem:[#allocation8 + $0x80] sm:$0xff]
    %v359 = vld [vmem:[#allocation8 + $0x88] sm:$0xff]
    %v360 = vld [vmem:[#allocation8 + $0x90] sm:$0xff]
    %v361 = vld [vmem:[#allocation8 + $0x98] sm:$0xff]
    %v362 = vld [vmem:[#allocation8 + $0xa0] sm:$0xff]
    %v363 = vld [vmem:[#allocation8 + $0xa8] sm:$0xff]
    %v364 = vld [vmem:[#allocation8 + $0xb0] sm:$0xff]
    %v365 = vld [vmem:[#allocation8 + $0xb8] sm:$0xff]
    %v366 = vld [vmem:[#allocation8 + $0xc0] sm:$0xff]
    %v367 = vld [vmem:[#allocation8 + $0xc8] sm:$0xff]
    %v368 = vld [vmem:[#allocation8 + $0xd0] sm:$0xff]
    %v369 = vld [vmem:[#allocation8 + $0xd8] sm:$0xff]
    %v370 = vld [vmem:[#allocation8 + $0xe0] sm:$0xff]
    %v371 = vld [vmem:[#allocation8 + $0xe8] sm:$0xff]
    %v372 = vld [vmem:[#allocation8 + $0xf0] sm:$0xff]
    %v373 = vld [vmem:[#allocation8 + $0xf8] sm:$0xff]
    %v374 = vld [vmem:[%s7] sm:$0x1]
    %v376 = vlaneseq
    %v377 = vshrl.u32 %v376, 7
    %v378 = vsub.s32 0, %v377
    %v379 = vrot.slane %v374, %v378
    %381 = vmatprep.subr.mxu0 0.0
    %382 = vmatpush1.msra.mxu0 %v357
    %383 = vmatprep.subr.mxu0 0.0
    %384 = vmatpush1.msra.mxu0 %v356
    %385 = vmatprep.subr.mxu0 0.0
    %386 = vmatpush1.msra.mxu0 %v355
    %387 = vmatprep.subr.mxu0 0.0
    %388 = vmatpush1.msra.mxu0 %v354
    %389 = vmatprep.subr.mxu0 0.0
    %390 = vmatpush1.msra.mxu0 %v353
    %391 = vmatprep.subr.mxu0 0.0
    %392 = vmatpush1.msra.mxu0 %v352
    %393 = vmatprep.subr.mxu0 0.0
    %394 = vmatpush1.msra.mxu0 %v351
    %395 = vmatprep.subr.mxu0 0.0
    %396 = vmatpush1.msra.mxu0 %v350
    %397 = vmatprep.subr.mxu0 0.0
    %398 = vmatpush1.msra.mxu0 %v349
    %399 = vmatprep.subr.mxu0 0.0
    %400 = vmatpush1.msra.mxu0 %v348
    %401 = vmatprep.subr.mxu0 0.0
    %402 = vmatpush1.msra.mxu0 %v347
    %403 = vmatprep.subr.mxu0 0.0
    %404 = vmatpush1.msra.mxu0 %v346
    %405 = vmatprep.subr.mxu0 0.0
    %406 = vmatpush1.msra.mxu0 %v345
    %407 = vmatprep.subr.mxu0 0.0
    %408 = vmatpush1.msra.mxu0 %v344
    %409 = vmatprep.subr.mxu0 0.0
    %410 = vmatpush1.msra.mxu0 %v343
    %411 = vmatprep.subr.mxu0 0.0
    %412 = vmatpush1.msra.mxu0 %v342
    %413 = vmatprep.subr.mxu0 0.0
    %414 = vmatpush2.msra.mxu0 %v373
    %415 = vmatprep.subr.mxu0 0.0
    %416 = vmatpush2.msra.mxu0 %v372
    %417 = vmatprep.subr.mxu0 0.0
    %418 = vmatpush2.msra.mxu0 %v371
    %419 = vmatprep.subr.mxu0 0.0
    %420 = vmatpush2.msra.mxu0 %v370
    %421 = vmatprep.subr.mxu0 0.0
    %422 = vmatpush2.msra.mxu0 %v369
    %423 = vmatprep.subr.mxu0 0.0
    %424 = vmatpush2.msra.mxu0 %v368
    %425 = vmatprep.subr.mxu0 0.0
    %426 = vmatpush2.msra.mxu0 %v367
    %427 = vmatprep.subr.mxu0 0.0
    %428 = vmatpush2.msra.mxu0 %v366
    %429 = vmatprep.subr.mxu0 0.0
    %430 = vmatpush2.msra.mxu0 %v365
    %431 = vmatprep.subr.mxu0 0.0
    %432 = vmatpush2.msra.mxu0 %v364
    %433 = vmatprep.subr.mxu0 0.0
    %434 = vmatpush2.msra.mxu0 %v363
    %435 = vmatprep.subr.mxu0 0.0
    %436 = vmatpush2.msra.mxu0 %v362
    %437 = vmatprep.subr.mxu0 0.0
    %438 = vmatpush2.msra.mxu0 %v361
    %439 = vmatprep.subr.mxu0 0.0
    %440 = vmatpush2.msra.mxu0 %v360
    %441 = vmatprep.subr.mxu0 0.0
    %442 = vmatpush2.msra.mxu0 %v359
    %443 = vmatprep.subr.mxu0 0.0
    %444 = vmatpush2.msra.mxu0 %v358
    %445 = vmatprep.mubr.f32.mxu0 %v341
    %446 = vmatmul.mubr.f32.gmra.mxu0 %v340
    %v447 = vpop.f32.mrf.mxu0
    %v448 = vadd.f32 %v379, %v447
    %v449 = vpop.f32.mrf.mxu0
    %450 = vdwg.mxu0
    %v451 = vmax.f32 %v448, 0.0
    %v452 = vadd.f32 %v81, %v451
    %453 = vst [vmem:[#allocation10] sm:$0xff] %v452
    // Predicated region
    $region50: #{tpu_custom_call.1} parent=1 // pred_check
      _
    $region51: #{tpu_custom_call.1} parent=1 // pred_check_branch
      %455 = sbr.rel (0) target = $region53
    $region52: #{tpu_custom_call.1} parent=1 // pred_region
      %s457 = ssub.s32 128, 128
      %458 = vsyncadd [#allocation4], %s457
      %s460 = sshll.u32 [#allocation10], 4
      %s461 = int_to_ptr.vmem [resolvable:$true] %s460
      %463 = dma.vmem_to_hbm [thread:$0]  %s461, 128, %s8, [#allocation4]
    $region53: #{tpu_custom_call.1} parent=1 // pred_fallthru
      _
    // Predicated region
    $region54: #{tpu_custom_call.1} parent=1 // pred_check
      _
    $region55: #{tpu_custom_call.1} parent=1 // pred_check_branch
      %465 = sbr.rel (0) target = $region57
    $region56: #{tpu_custom_call.1} parent=1 // pred_region
      %466 = dma.done [#allocation4], 128
    $region57: #{tpu_custom_call.1} parent=1 // pred_fallthru
      _
    %467 = vsyncpa [#allocation3], 1
    %468 = vsyncpa [#allocation6], 1
    %469 = vsyncpa [#allocation9], 1
    %470 = vsyncpa [#allocation4], 1

</llo_original>
